<compile_context>
chip_gen: v6e
topology: v6e:2x2x1
jax: 0.10.0
libtpu: 0.0.40
codegen_flags: <defaults>
</compile_context>

<pallas_src>
import jax
import jax.numpy as jnp
from jax import lax
from jax.experimental import pallas as pl
from jax.experimental.pallas import tpu as pltpu

EMBED = 16
H1 = 64
H2 = 32
NUM_USERS = 4
NUM_MOVIES = 5
V = NUM_USERS + NUM_MOVIES
LANE = 128
TB = 128  # batch tile (rows per grid step); also the output lane width


def ncf_kernel(ids_ref, ft_ref, b1_ref, w2_ref, b2_ref, w3_ref, b3_ref, out_ref):
    tb = ids_ref.shape[0]
    v = ft_ref.shape[0]

    # "Two-hot" row: 1.0 at user_id and at NUM_USERS + movie_id.  Against the
    # pre-fused (block-diag table @ w1) this yields fc1's pre-activation in a
    # single MXU pass (exact: there is no nonlinearity between lookup and fc1).
    ids = ids_ref[...]                                        # (TB, 2) int32
    vocab_iota = lax.broadcasted_iota(jnp.int32, (tb, v), 1)  # (TB, V)
    two_hot = ((ids[:, 0:1] == vocab_iota) |
               (ids[:, 1:2] == vocab_iota)).astype(jnp.float32)

    # fused embedding + fc1 + relu (lane-padded to 128; pad cols are relu(0)=0).
    h1 = jnp.dot(two_hot, ft_ref[...],
                 preferred_element_type=jnp.float32) + b1_ref[...]
    h1 = jnp.maximum(h1, 0.0)                                 # (TB, 128)

    # fc2 + relu (lane-padded the same way).
    h2 = jnp.dot(h1, w2_ref[...],
                 preferred_element_type=jnp.float32) + b2_ref[...]
    h2 = jnp.maximum(h2, 0.0)                                 # (TB, 128)

    # fc3: one M=1 MXU pass producing the batch on the lane axis -> lane-dense
    # (1, TB) store, no (Bp,128) broadcast slab.
    logits = jnp.dot(w3_ref[...], h2.T,
                     preferred_element_type=jnp.float32)      # (1, TB)
    out_ref[...] = logits + b3_ref[0, 0]


def _round_up(x, m):
    return (x + m - 1) // m * m


def prepare_params(params):
    """One-time parameter packing (hoisted out of the per-call forward path)."""
    # Block-diagonal embedding table: rows 0..NU-1 carry [u_emb, 0],
    # rows NU.. carry [0, m_emb].
    table = jnp.zeros((V, 2 * EMBED), jnp.float32)
    table = table.at[:NUM_USERS, :EMBED].set(params["user_emb"])
    table = table.at[NUM_USERS:, EMBED:].set(params["movie_emb"])

    # Zero-pad hidden dims to 128 lanes, then fuse lookup+fc1: (V, 128).
    w1 = jnp.zeros((2 * EMBED, LANE), jnp.float32).at[:, :H1].set(params["w1"])
    fused_table = table @ w1

    b1 = jnp.zeros((1, LANE), jnp.float32).at[:, :H1].set(params["b1"])
    w2 = jnp.zeros((LANE, LANE), jnp.float32).at[:H1, :H2].set(params["w2"])
    b2 = jnp.zeros((1, LANE), jnp.float32).at[:, :H2].set(params["b2"])
    w3 = jnp.zeros((1, LANE), jnp.float32).at[:, :H2].set(params["w3"].reshape(1, H2))
    b3 = params["b3"].reshape(1, 1)
    return {"fused_table": fused_table, "b1": b1, "w2": w2, "b2": b2,
            "w3": w3, "b3": b3}


@jax.jit
def ncf_forward(user, movie, prepped):
    """user, movie: int [B]. Returns f32 [B] (matches torch's x.squeeze())."""
    B = user.shape[0]
    Bp = _round_up(max(B, TB), TB)
    nb = Bp // TB

    ids = jnp.stack([user.astype(jnp.int32),
                     movie.astype(jnp.int32) + NUM_USERS], axis=1)  # (B, 2)
    # Pad with -1 so padded rows produce an all-zero two-hot row (sliced away).
    ids = jnp.pad(ids, ((0, Bp - B), (0, 0)), constant_values=-1)

    const = lambda i: (0, 0)
    grid_spec = pltpu.PrefetchScalarGridSpec(
        num_scalar_prefetch=0,
        grid=(nb,),
        in_specs=[
            pl.BlockSpec((TB, 2), lambda i: (i, 0)),        # ids: blocked on batch
            pl.BlockSpec((V, LANE), const),                 # fused_table (resident)
            pl.BlockSpec((1, LANE), const),                 # b1
            pl.BlockSpec((LANE, LANE), const),              # w2
            pl.BlockSpec((1, LANE), const),                 # b2
            pl.BlockSpec((1, LANE), const),                 # w3
            pl.BlockSpec(memory_space=pltpu.MemorySpace.SMEM),  # b3 scalar
        ],
        out_specs=pl.BlockSpec((1, TB), lambda i: (i, 0)),  # lane-dense row / step
    )

    out = pl.pallas_call(
        ncf_kernel,
        out_shape=jax.ShapeDtypeStruct((nb, TB), jnp.float32),
        grid_spec=grid_spec,
        compiler_params=pltpu.CompilerParams(
            dimension_semantics=("parallel",),   # batch tiles independent (v7x: 2 TCs)
            vmem_limit_bytes=16 * 1024 * 1024,   # sized for v7x's 64 MiB VMEM too
        ),
    )(ids, prepped["fused_table"], prepped["b1"], prepped["w2"],
      prepped["b2"], prepped["w3"], prepped["b3"])

    return out.reshape(Bp)[:B]


def init_params(key):
    ks = jax.random.split(key, 8)
    s = 0.1
    return {
        "user_emb": s * jax.random.normal(ks[0], (NUM_USERS, EMBED), jnp.float32),
        "movie_emb": s * jax.random.normal(ks[1], (NUM_MOVIES, EMBED), jnp.float32),
        "w1": s * jax.random.normal(ks[2], (2 * EMBED, H1), jnp.float32),
        "b1": s * jax.random.normal(ks[3], (1, H1), jnp.float32),
        "w2": s * jax.random.normal(ks[4], (H1, H2), jnp.float32),
        "b2": s * jax.random.normal(ks[5], (1, H2), jnp.float32),
        "w3": s * jax.random.normal(ks[6], (H2, 1), jnp.float32),
        "b3": s * jax.random.normal(ks[7], (1, 1), jnp.float32),
    }


def ncf_reference(user, movie, params):
    u = params["user_emb"][user]
    m = params["movie_emb"][movie]
    x = jnp.concatenate([u, m], axis=-1)
    x = jnp.maximum(x @ params["w1"] + params["b1"], 0.0)
    x = jnp.maximum(x @ params["w2"] + params["b2"], 0.0)
    x = x @ params["w3"] + params["b3"]
    return x.squeeze()


if __name__ == "__main__":
    key = jax.random.PRNGKey(0)
    params = init_params(key)
    prepped = prepare_params(params)          # one-time packing, off the hot path

    # Mapped ids from the toy dataset in ncf_model.py (8 interactions).
    user = jnp.array([0, 0, 1, 1, 2, 2, 3, 3], dtype=jnp.int32)
    movie = jnp.array([0, 1, 0, 2, 1, 3, 0, 4], dtype=jnp.int32)

    out = ncf_forward(user, movie, prepped)
    out = jax.block_until_ready(out)

    ref = ncf_reference(user, movie, params)
    assert out.shape == (8,)
    assert jnp.allclose(out, ref, atol=1e-5, rtol=1e-5)
    print("KERNEL_OK")
</pallas_src>

<mosaic_0001>
module attributes {stable_mosaic.version = 11 : i64} {
  func.func @ncf_kernel(%arg0: i32, %arg1: memref<128x2xi32, #tpu.memory_space<vmem>>, %arg2: memref<9x128xf32, #tpu.memory_space<vmem>>, %arg3: memref<1x128xf32, #tpu.memory_space<vmem>>, %arg4: memref<128x128xf32, #tpu.memory_space<vmem>>, %arg5: memref<1x128xf32, #tpu.memory_space<vmem>>, %arg6: memref<1x128xf32, #tpu.memory_space<vmem>>, %arg7: memref<1x1xf32, #tpu.memory_space<smem>>, %arg8: memref<1x128xf32, #tpu.memory_space<vmem>>) attributes {dimension_semantics = [#tpu.dimension_semantics<parallel>], iteration_bounds = array<i64: 1>, scalar_prefetch = 0 : i64, scratch_operands = 0 : i64, tpu.core_type = #tpu.core_type<tc>, window_params = [{transform_indices = @transform_0, window_bounds = array<i64: 128, 2>}, {pipeline_mode = #tpu.pipeline_mode<synchronous>, transform_indices = @transform_1, window_bounds = array<i64: 9, 128>}, {pipeline_mode = #tpu.pipeline_mode<synchronous>, transform_indices = @transform_2, window_bounds = array<i64: 1, 128>}, {pipeline_mode = #tpu.pipeline_mode<synchronous>, transform_indices = @transform_3, window_bounds = array<i64: 128, 128>}, {pipeline_mode = #tpu.pipeline_mode<synchronous>, transform_indices = @transform_4, window_bounds = array<i64: 1, 128>}, {pipeline_mode = #tpu.pipeline_mode<synchronous>, transform_indices = @transform_5, window_bounds = array<i64: 1, 128>}, {transform_indices = @transform_6, window_bounds = array<i64: 1, 1>}, {transform_indices = @transform_7, window_bounds = array<i64: 1, 128>}]} {
    %c0 = arith.constant 0 : index
    %c0_0 = arith.constant 0 : index
    %0 = vector.load %arg1[%c0, %c0_0] : memref<128x2xi32, #tpu.memory_space<vmem>>, vector<128x2xi32>
    %1 = tpu.iota {dimensions = array<i32: 1>} : vector<128x9xi32>
    %2 = vector.extract_strided_slice %0 {offsets = [0, 0], sizes = [128, 1], strides = [1, 1]} : vector<128x2xi32> to vector<128x1xi32>
    %3 = vector.broadcast %2 : vector<128x1xi32> to vector<128x9xi32>
    %4 = arith.cmpi eq, %3, %1 : vector<128x9xi32>
    %5 = vector.extract_strided_slice %0 {offsets = [0, 1], sizes = [128, 1], strides = [1, 1]} : vector<128x2xi32> to vector<128x1xi32>
    %6 = vector.broadcast %5 : vector<128x1xi32> to vector<128x9xi32>
    %7 = arith.cmpi eq, %6, %1 : vector<128x9xi32>
    %8 = arith.ori %4, %7 : vector<128x9xi1>
    %9 = arith.extui %8 : vector<128x9xi1> to vector<128x9xi32>
    %10 = arith.sitofp %9 : vector<128x9xi32> to vector<128x9xf32>
    %c0_1 = arith.constant 0 : index
    %c0_2 = arith.constant 0 : index
    %11 = vector.load %arg2[%c0_1, %c0_2] : memref<9x128xf32, #tpu.memory_space<vmem>>, vector<9x128xf32>
    %cst = arith.constant dense<0.000000e+00> : vector<128x128xf32>
    %12 = tpu.matmul %10, %11, %cst {dimension_numbers = #tpu.dot_dimension_numbers<[1], [0], [0], [1], [0, 0, 1, 1], [], []>} : vector<128x9xf32>, vector<9x128xf32>, vector<128x128xf32> -> vector<128x128xf32>
    %c0_3 = arith.constant 0 : index
    %c0_4 = arith.constant 0 : index
    %13 = vector.load %arg3[%c0_3, %c0_4] : memref<1x128xf32, #tpu.memory_space<vmem>>, vector<1x128xf32>
    %14 = vector.broadcast %13 : vector<1x128xf32> to vector<128x128xf32>
    %15 = arith.addf %12, %14 : vector<128x128xf32>
    %cst_5 = arith.constant 0.000000e+00 : f32
    %16 = vector.broadcast %cst_5 : f32 to vector<128x128xf32>
    %17 = arith.maximumf %15, %16 : vector<128x128xf32>
    %c0_6 = arith.constant 0 : index
    %c0_7 = arith.constant 0 : index
    %18 = vector.load %arg4[%c0_6, %c0_7] : memref<128x128xf32, #tpu.memory_space<vmem>>, vector<128x128xf32>
    %cst_8 = arith.constant dense<0.000000e+00> : vector<128x128xf32>
    %19 = tpu.matmul %17, %18, %cst_8 {dimension_numbers = #tpu.dot_dimension_numbers<[1], [0], [0], [1], [0, 0, 1, 1], [], []>} : vector<128x128xf32>, vector<128x128xf32>, vector<128x128xf32> -> vector<128x128xf32>
    %c0_9 = arith.constant 0 : index
    %c0_10 = arith.constant 0 : index
    %20 = vector.load %arg5[%c0_9, %c0_10] : memref<1x128xf32, #tpu.memory_space<vmem>>, vector<1x128xf32>
    %21 = vector.broadcast %20 : vector<1x128xf32> to vector<128x128xf32>
    %22 = arith.addf %19, %21 : vector<128x128xf32>
    %cst_11 = arith.constant 0.000000e+00 : f32
    %23 = vector.broadcast %cst_11 : f32 to vector<128x128xf32>
    %24 = arith.maximumf %22, %23 : vector<128x128xf32>
    %c0_12 = arith.constant 0 : index
    %c0_13 = arith.constant 0 : index
    %25 = vector.load %arg6[%c0_12, %c0_13] : memref<1x128xf32, #tpu.memory_space<vmem>>, vector<1x128xf32>
    %26 = tpu.transpose %24, [1, 0] : vector<128x128xf32> -> vector<128x128xf32>
    %cst_14 = arith.constant dense<0.000000e+00> : vector<1x128xf32>
    %27 = tpu.matmul %25, %26, %cst_14 {dimension_numbers = #tpu.dot_dimension_numbers<[1], [0], [0], [1], [0, 0, 1, 1], [], []>} : vector<1x128xf32>, vector<128x128xf32>, vector<1x128xf32> -> vector<1x128xf32>
    %c0_15 = arith.constant 0 : index
    %c0_16 = arith.constant 0 : index
    %28 = memref.load %arg7[%c0_15, %c0_16] : memref<1x1xf32, #tpu.memory_space<smem>>
    %29 = vector.broadcast %28 : f32 to vector<1x128xf32>
    %30 = arith.addf %27, %29 : vector<1x128xf32>
    %c0_17 = arith.constant 0 : index
    %c0_18 = arith.constant 0 : index
    %31 = vector.load %arg8[%c0_17, %c0_18] : memref<1x128xf32, #tpu.memory_space<vmem>>, vector<1x128xf32>
    tpu.vector_store %arg8[%c0_17, %c0_18], %30 {strides = array<i32>} : memref<1x128xf32, #tpu.memory_space<vmem>>, vector<1x128xf32>,
    return
  }
  func.func @transform_0(%arg0: i32) -> (i32, i32) {
    %c0_i32 = arith.constant 0 : i32
    %c0_i32_0 = arith.constant 0 : i32
    return %arg0, %c0_i32 : i32, i32
  }
  func.func @transform_1(%arg0: i32) -> (i32, i32) {
    %c0_i32 = arith.constant 0 : i32
    %c0_i32_0 = arith.constant 0 : i32
    %c0_i32_1 = arith.constant 0 : i32
    return %c0_i32, %c0_i32_0 : i32, i32
  }
  func.func @transform_2(%arg0: i32) -> (i32, i32) {
    %c0_i32 = arith.constant 0 : i32
    %c0_i32_0 = arith.constant 0 : i32
    %c0_i32_1 = arith.constant 0 : i32
    return %c0_i32, %c0_i32_0 : i32, i32
  }
  func.func @transform_3(%arg0: i32) -> (i32, i32) {
    %c0_i32 = arith.constant 0 : i32
    %c0_i32_0 = arith.constant 0 : i32
    %c0_i32_1 = arith.constant 0 : i32
    return %c0_i32, %c0_i32_0 : i32, i32
  }
  func.func @transform_4(%arg0: i32) -> (i32, i32) {
    %c0_i32 = arith.constant 0 : i32
    %c0_i32_0 = arith.constant 0 : i32
    %c0_i32_1 = arith.constant 0 : i32
    return %c0_i32, %c0_i32_0 : i32, i32
  }
  func.func @transform_5(%arg0: i32) -> (i32, i32) {
    %c0_i32 = arith.constant 0 : i32
    %c0_i32_0 = arith.constant 0 : i32
    %c0_i32_1 = arith.constant 0 : i32
    return %c0_i32, %c0_i32_0 : i32, i32
  }
  func.func @transform_6(%arg0: i32) -> (i32, i32) {
    %c0_i32 = arith.constant 0 : i32
    %c0_i32_0 = arith.constant 0 : i32
    %c0_i32_1 = arith.constant 0 : i32
    return %c0_i32, %c0_i32_0 : i32, i32
  }
  func.func @transform_7(%arg0: i32) -> (i32, i32) {
    %c0_i32 = arith.constant 0 : i32
    %c0_i32_0 = arith.constant 0 : i32
    return %arg0, %c0_i32 : i32, i32
  }
}

</mosaic_0001>

<llo_original>
// kernel: ncf_forward.1
$region0: #{ncf_forward.1}
  #allocation0 [shape = 'u32[]', space=smem, size = 0x4, offset = 0x4, fixed_abs, tag = 'smem constant byte address 0x4 - core index']
  #allocation1 [shape = 'u32[144,128]{1,0:T(1,128)}', space=vmem, size = 0x12000, scoped, tag = 'internal scratch']
  #allocation2 [shape = 'f32[1,1]{1,0:T(1,128)S(6)}', space=smem, size = 0x200, scoped, tag = 'scoped memory for ncf_forward.1']
  %s0 = inlined_call_operand.vmem [shape: s32[128,2], index: 0, kind: input, shape index: {}]
  %s1 = inlined_call_operand.vmem [shape: f32[9,128], index: 1, kind: input, shape index: {}]
  %s2 = inlined_call_operand.vmem [shape: f32[1,128], index: 2, kind: input, shape index: {}]
  %s3 = inlined_call_operand.vmem [shape: f32[128,128], index: 3, kind: input, shape index: {}]
  %s4 = inlined_call_operand.vmem [shape: f32[1,128], index: 4, kind: input, shape index: {}]
  %s5 = inlined_call_operand.vmem [shape: f32[1,128], index: 5, kind: input, shape index: {}]
  %s6 = inlined_call_operand.<no memory space> [shape: f32[1,1], index: 6, kind: input, shape index: {}]
  %s7 = inlined_call_operand.vmem [shape: f32[1,128], index: 7, kind: output, shape index: {}]
  %s8 = sld [smem:[#allocation0]]
  $region38: #{ncf_forward.1} parent=0
    _
  %s10 = ssub.s32 1, %s8
  %s11 = scalar_select 0, %s10, %s8
  %12 = sst [smem:[#allocation2]] %s6
  // Predicated region
  $region2: #{ncf_forward.1} parent=0 // pred_check
    _
  $region3: #{ncf_forward.1} parent=0 // pred_check_branch
    %14 = sbr.rel (0) target = $region5
  $region4: #{ncf_forward.1} parent=0 // pred_region
    _
  $region5: #{ncf_forward.1} parent=0 // pred_fallthru
    _
  // Predicated region
  $region6: #{ncf_forward.1} parent=0 // pred_check
    _
  $region7: #{ncf_forward.1} parent=0 // pred_check_branch
    %16 = sbr.rel (0) target = $region9
  $region8: #{ncf_forward.1} parent=0 // pred_region
    _
  $region9: #{ncf_forward.1} parent=0 // pred_fallthru
    _
  // Predicated region
  $region10: #{ncf_forward.1} parent=0 // pred_check
    _
  $region11: #{ncf_forward.1} parent=0 // pred_check_branch
    %18 = sbr.rel (0) target = $region13
  $region12: #{ncf_forward.1} parent=0 // pred_region
    _
  $region13: #{ncf_forward.1} parent=0 // pred_fallthru
    _
  // Predicated region
  $region14: #{ncf_forward.1} parent=0 // pred_check
    _
  $region15: #{ncf_forward.1} parent=0 // pred_check_branch
    %20 = sbr.rel (0) target = $region17
  $region16: #{ncf_forward.1} parent=0 // pred_region
    _
  $region17: #{ncf_forward.1} parent=0 // pred_fallthru
    _
  // Predicated region
  $region18: #{ncf_forward.1} parent=0 // pred_check
    _
  $region19: #{ncf_forward.1} parent=0 // pred_check_branch
    %22 = sbr.rel (0) target = $region21
  $region20: #{ncf_forward.1} parent=0 // pred_region
    _
  $region21: #{ncf_forward.1} parent=0 // pred_fallthru
    _
  // Predicated region
  $region22: #{ncf_forward.1} parent=0 // pred_check
    _
  $region23: #{ncf_forward.1} parent=0 // pred_check_branch
    %24 = sbr.rel (0) target = $region25
  $region24: #{ncf_forward.1} parent=0 // pred_region
    _
  $region25: #{ncf_forward.1} parent=0 // pred_fallthru
    _
  // Predicated region
  $region26: #{ncf_forward.1} parent=0 // pred_check
    _
  $region27: #{ncf_forward.1} parent=0 // pred_check_branch
    %26 = sbr.rel (0) target = $region29
  $region28: #{ncf_forward.1} parent=0 // pred_region
    _
  $region29: #{ncf_forward.1} parent=0 // pred_fallthru
    _
  %v27 = vld [vmem:[%s0] sm:$0xff]
  %v28 = vld [vmem:[%s0 + $0x8] sm:$0xff]
  %v29 = vld [vmem:[%s0 + $0x10] sm:$0xff]
  %v30 = vld [vmem:[%s0 + $0x18] sm:$0xff]
  %v31 = vld [vmem:[%s0 + $0x20] sm:$0xff]
  %v32 = vld [vmem:[%s0 + $0x28] sm:$0xff]
  %v33 = vld [vmem:[%s0 + $0x30] sm:$0xff]
  %v34 = vld [vmem:[%s0 + $0x38] sm:$0xff]
  %v35 = vld [vmem:[%s0 + $0x40] sm:$0xff]
  %v36 = vld [vmem:[%s0 + $0x48] sm:$0xff]
  %v37 = vld [vmem:[%s0 + $0x50] sm:$0xff]
  %v38 = vld [vmem:[%s0 + $0x58] sm:$0xff]
  %v39 = vld [vmem:[%s0 + $0x60] sm:$0xff]
  %v40 = vld [vmem:[%s0 + $0x68] sm:$0xff]
  %v41 = vld [vmem:[%s0 + $0x70] sm:$0xff]
  %v42 = vld [vmem:[%s0 + $0x78] sm:$0xff]
  %v43 = vlaneseq
  %v44 = vand.u32 %v43, 127
  %45 = vset.pattern.permute.xlu0 0
  %46 = vperm.xlu0 %45, %v27
  %v47 = vpop.permute.xlu0 %46
  %48 = vset.pattern.permute.xlu0 0
  %49 = vperm.xlu0 %48, %v28
  %v50 = vpop.permute.xlu0 %49
  %51 = vset.pattern.permute.xlu0 0
  %52 = vperm.xlu0 %51, %v29
  %v53 = vpop.permute.xlu0 %52
  %54 = vset.pattern.permute.xlu0 0
  %55 = vperm.xlu0 %54, %v30
  %v56 = vpop.permute.xlu0 %55
  %57 = vset.pattern.permute.xlu0 0
  %58 = vperm.xlu0 %57, %v31
  %v59 = vpop.permute.xlu0 %58
  %60 = vset.pattern.permute.xlu0 0
  %61 = vperm.xlu0 %60, %v32
  %v62 = vpop.permute.xlu0 %61
  %63 = vset.pattern.permute.xlu0 0
  %64 = vperm.xlu0 %63, %v33
  %v65 = vpop.permute.xlu0 %64
  %66 = vset.pattern.permute.xlu0 0
  %67 = vperm.xlu0 %66, %v34
  %v68 = vpop.permute.xlu0 %67
  %69 = vset.pattern.permute.xlu0 0
  %70 = vperm.xlu0 %69, %v35
  %v71 = vpop.permute.xlu0 %70
  %72 = vset.pattern.permute.xlu0 0
  %73 = vperm.xlu0 %72, %v36
  %v74 = vpop.permute.xlu0 %73
  %75 = vset.pattern.permute.xlu0 0
  %76 = vperm.xlu0 %75, %v37
  %v77 = vpop.permute.xlu0 %76
  %78 = vset.pattern.permute.xlu0 0
  %79 = vperm.xlu0 %78, %v38
  %v80 = vpop.permute.xlu0 %79
  %81 = vset.pattern.permute.xlu0 0
  %82 = vperm.xlu0 %81, %v39
  %v83 = vpop.permute.xlu0 %82
  %84 = vset.pattern.permute.xlu0 0
  %85 = vperm.xlu0 %84, %v40
  %v86 = vpop.permute.xlu0 %85
  %87 = vset.pattern.permute.xlu0 0
  %88 = vperm.xlu0 %87, %v41
  %v89 = vpop.permute.xlu0 %88
  %90 = vset.pattern.permute.xlu0 0
  %91 = vperm.xlu0 %90, %v42
  %v92 = vpop.permute.xlu0 %91
  %vm93 = vcmp.eq.s32.totalorder %v47, %v44
  %vm94 = vcmp.eq.s32.totalorder %v50, %v44
  %vm95 = vcmp.eq.s32.totalorder %v53, %v44
  %vm96 = vcmp.eq.s32.totalorder %v56, %v44
  %vm97 = vcmp.eq.s32.totalorder %v59, %v44
  %vm98 = vcmp.eq.s32.totalorder %v62, %v44
  %vm99 = vcmp.eq.s32.totalorder %v65, %v44
  %vm100 = vcmp.eq.s32.totalorder %v68, %v44
  %vm101 = vcmp.eq.s32.totalorder %v71, %v44
  %vm102 = vcmp.eq.s32.totalorder %v74, %v44
  %vm103 = vcmp.eq.s32.totalorder %v77, %v44
  %vm104 = vcmp.eq.s32.totalorder %v80, %v44
  %vm105 = vcmp.eq.s32.totalorder %v83, %v44
  %vm106 = vcmp.eq.s32.totalorder %v86, %v44
  %vm107 = vcmp.eq.s32.totalorder %v89, %v44
  %vm108 = vcmp.eq.s32.totalorder %v92, %v44
  %109 = vset.pattern.permute.xlu0 1
  %110 = vperm.xlu0 %109, %v27
  %v111 = vpop.permute.xlu0 %110
  %112 = vset.pattern.permute.xlu0 1
  %113 = vperm.xlu0 %112, %v28
  %v114 = vpop.permute.xlu0 %113
  %115 = vset.pattern.permute.xlu0 1
  %116 = vperm.xlu0 %115, %v29
  %v117 = vpop.permute.xlu0 %116
  %118 = vset.pattern.permute.xlu0 1
  %119 = vperm.xlu0 %118, %v30
  %v120 = vpop.permute.xlu0 %119
  %121 = vset.pattern.permute.xlu0 1
  %122 = vperm.xlu0 %121, %v31
  %v123 = vpop.permute.xlu0 %122
  %124 = vset.pattern.permute.xlu0 1
  %125 = vperm.xlu0 %124, %v32
  %v126 = vpop.permute.xlu0 %125
  %127 = vset.pattern.permute.xlu0 1
  %128 = vperm.xlu0 %127, %v33
  %v129 = vpop.permute.xlu0 %128
  %130 = vset.pattern.permute.xlu0 1
  %131 = vperm.xlu0 %130, %v34
  %v132 = vpop.permute.xlu0 %131
  %133 = vset.pattern.permute.xlu0 1
  %134 = vperm.xlu0 %133, %v35
  %v135 = vpop.permute.xlu0 %134
  %136 = vset.pattern.permute.xlu0 1
  %137 = vperm.xlu0 %136, %v36
  %v138 = vpop.permute.xlu0 %137
  %139 = vset.pattern.permute.xlu0 1
  %140 = vperm.xlu0 %139, %v37
  %v141 = vpop.permute.xlu0 %140
  %142 = vset.pattern.permute.xlu0 1
  %143 = vperm.xlu0 %142, %v38
  %v144 = vpop.permute.xlu0 %143
  %145 = vset.pattern.permute.xlu0 1
  %146 = vperm.xlu0 %145, %v39
  %v147 = vpop.permute.xlu0 %146
  %148 = vset.pattern.permute.xlu0 1
  %149 = vperm.xlu0 %148, %v40
  %v150 = vpop.permute.xlu0 %149
  %151 = vset.pattern.permute.xlu0 1
  %152 = vperm.xlu0 %151, %v41
  %v153 = vpop.permute.xlu0 %152
  %154 = vset.pattern.permute.xlu0 1
  %155 = vperm.xlu0 %154, %v42
  %v156 = vpop.permute.xlu0 %155
  %vm157 = vcmp.eq.s32.totalorder %v111, %v44
  %vm158 = vcmp.eq.s32.totalorder %v114, %v44
  %vm159 = vcmp.eq.s32.totalorder %v117, %v44
  %vm160 = vcmp.eq.s32.totalorder %v120, %v44
  %vm161 = vcmp.eq.s32.totalorder %v123, %v44
  %vm162 = vcmp.eq.s32.totalorder %v126, %v44
  %vm163 = vcmp.eq.s32.totalorder %v129, %v44
  %vm164 = vcmp.eq.s32.totalorder %v132, %v44
  %vm165 = vcmp.eq.s32.totalorder %v135, %v44
  %vm166 = vcmp.eq.s32.totalorder %v138, %v44
  %vm167 = vcmp.eq.s32.totalorder %v141, %v44
  %vm168 = vcmp.eq.s32.totalorder %v144, %v44
  %vm169 = vcmp.eq.s32.totalorder %v147, %v44
  %vm170 = vcmp.eq.s32.totalorder %v150, %v44
  %vm171 = vcmp.eq.s32.totalorder %v153, %v44
  %vm172 = vcmp.eq.s32.totalorder %v156, %v44
  %vm173 = vmor %vm93, %vm157
  %vm174 = vmor %vm94, %vm158
  %vm175 = vmor %vm95, %vm159
  %vm176 = vmor %vm96, %vm160
  %vm177 = vmor %vm97, %vm161
  %vm178 = vmor %vm98, %vm162
  %vm179 = vmor %vm99, %vm163
  %vm180 = vmor %vm100, %vm164
  %vm181 = vmor %vm101, %vm165
  %vm182 = vmor %vm102, %vm166
  %vm183 = vmor %vm103, %vm167
  %vm184 = vmor %vm104, %vm168
  %vm185 = vmor %vm105, %vm169
  %vm186 = vmor %vm106, %vm170
  %vm187 = vmor %vm107, %vm171
  %vm188 = vmor %vm108, %vm172
  %v189 = vsel %vm173, 1, 0
  %v190 = vsel %vm174, 1, 0
  %v191 = vsel %vm175, 1, 0
  %v192 = vsel %vm176, 1, 0
  %v193 = vsel %vm177, 1, 0
  %v194 = vsel %vm178, 1, 0
  %v195 = vsel %vm179, 1, 0
  %v196 = vsel %vm180, 1, 0
  %v197 = vsel %vm181, 1, 0
  %v198 = vsel %vm182, 1, 0
  %v199 = vsel %vm183, 1, 0
  %v200 = vsel %vm184, 1, 0
  %v201 = vsel %vm185, 1, 0
  %v202 = vsel %vm186, 1, 0
  %v203 = vsel %vm187, 1, 0
  %v204 = vsel %vm188, 1, 0
  %v205 = vcvt.s32.f32 %v189
  %v206 = vcvt.s32.f32 %v190
  %v207 = vcvt.s32.f32 %v191
  %v208 = vcvt.s32.f32 %v192
  %v209 = vcvt.s32.f32 %v193
  %v210 = vcvt.s32.f32 %v194
  %v211 = vcvt.s32.f32 %v195
  %v212 = vcvt.s32.f32 %v196
  %v213 = vcvt.s32.f32 %v197
  %v214 = vcvt.s32.f32 %v198
  %v215 = vcvt.s32.f32 %v199
  %v216 = vcvt.s32.f32 %v200
  %v217 = vcvt.s32.f32 %v201
  %v218 = vcvt.s32.f32 %v202
  %v219 = vcvt.s32.f32 %v203
  %v220 = vcvt.s32.f32 %v204
  %v221 = vld [vmem:[%s1] sm:$0xff]
  %v222 = vld [vmem:[%s1 + $0x8] sm:$0x1]
  %v223 = vld [vmem:[%s2] sm:$0x1]
  %v225 = vlaneseq
  %v226 = vshrl.u32 %v225, 7
  %v227 = vsub.s32 0, %v226
  %v228 = vrot.slane %v223, %v227
  %vm230 = vcmask 72704
  %v232 = vsel %vm230, %v205, 0
  %v235 = vsel %vm230, %v206, 0
  %v238 = vsel %vm230, %v207, 0
  %v241 = vsel %vm230, %v208, 0
  %v244 = vsel %vm230, %v209, 0
  %v247 = vsel %vm230, %v210, 0
  %v250 = vsel %vm230, %v211, 0
  %v253 = vsel %vm230, %v212, 0
  %v256 = vsel %vm230, %v213, 0
  %v259 = vsel %vm230, %v214, 0
  %v262 = vsel %vm230, %v215, 0
  %v265 = vsel %vm230, %v216, 0
  %v268 = vsel %vm230, %v217, 0
  %v271 = vsel %vm230, %v218, 0
  %v274 = vsel %vm230, %v219, 0
  %v277 = vsel %vm230, %v220, 0
  %vm279 = vcmask 1040384
  %v281 = vsel %vm279, %v222, 0
  %283 = vmatprep.subr.mxu0 0.0
  %284 = vmatpush1.msra.mxu0 0.0
  %285 = vmatprep.subr.mxu0 0.0
  %286 = vmatpush1.msra.mxu0 0.0
  %287 = vmatprep.subr.mxu0 0.0
  %288 = vmatpush1.msra.mxu0 0.0
  %289 = vmatprep.subr.mxu0 0.0
  %290 = vmatpush1.msra.mxu0 0.0
  %291 = vmatprep.subr.mxu0 0.0
  %292 = vmatpush1.msra.mxu0 0.0
  %293 = vmatprep.subr.mxu0 0.0
  %294 = vmatpush1.msra.mxu0 0.0
  %295 = vmatprep.subr.mxu0 0.0
  %296 = vmatpush1.msra.mxu0 0.0
  %297 = vmatprep.subr.mxu0 0.0
  %298 = vmatpush1.msra.mxu0 0.0
  %299 = vmatprep.subr.mxu0 0.0
  %300 = vmatpush1.msra.mxu0 0.0
  %301 = vmatprep.subr.mxu0 0.0
  %302 = vmatpush1.msra.mxu0 0.0
  %303 = vmatprep.subr.mxu0 0.0
  %304 = vmatpush1.msra.mxu0 0.0
  %305 = vmatprep.subr.mxu0 0.0
  %306 = vmatpush1.msra.mxu0 0.0
  %307 = vmatprep.subr.mxu0 0.0
  %308 = vmatpush1.msra.mxu0 0.0
  %309 = vmatprep.subr.mxu0 0.0
  %310 = vmatpush1.msra.mxu0 0.0
  %311 = vmatprep.subr.mxu0 0.0
  %312 = vmatpush1.msra.mxu0 %v281
  %313 = vmatprep.subr.mxu0 0.0
  %314 = vmatpush1.msra.mxu0 %v221
  %315 = vmatprep.subr.mxu0 0.0
  %316 = vmatpush2.msra.mxu0 0.0
  %317 = vmatprep.subr.mxu0 0.0
  %318 = vmatpush2.msra.mxu0 0.0
  %319 = vmatprep.subr.mxu0 0.0
  %320 = vmatpush2.msra.mxu0 0.0
  %321 = vmatprep.subr.mxu0 0.0
  %322 = vmatpush2.msra.mxu0 0.0
  %323 = vmatprep.subr.mxu0 0.0
  %324 = vmatpush2.msra.mxu0 0.0
  %325 = vmatprep.subr.mxu0 0.0
  %326 = vmatpush2.msra.mxu0 0.0
  %327 = vmatprep.subr.mxu0 0.0
  %328 = vmatpush2.msra.mxu0 0.0
  %329 = vmatprep.subr.mxu0 0.0
  %330 = vmatpush2.msra.mxu0 0.0
  %331 = vmatprep.subr.mxu0 0.0
  %332 = vmatpush2.msra.mxu0 0.0
  %333 = vmatprep.subr.mxu0 0.0
  %334 = vmatpush2.msra.mxu0 0.0
  %335 = vmatprep.subr.mxu0 0.0
  %336 = vmatpush2.msra.mxu0 0.0
  %337 = vmatprep.subr.mxu0 0.0
  %338 = vmatpush2.msra.mxu0 0.0
  %339 = vmatprep.subr.mxu0 0.0
  %340 = vmatpush2.msra.mxu0 0.0
  %341 = vmatprep.subr.mxu0 0.0
  %342 = vmatpush2.msra.mxu0 0.0
  %343 = vmatprep.subr.mxu0 0.0
  %344 = vmatpush2.msra.mxu0 0.0
  %345 = vmatprep.subr.mxu0 0.0
  %346 = vmatpush2.msra.mxu0 0.0
  %347 = vmatprep.mubr.f32.mxu0 0.0
  %348 = vmatmul.mubr.f32.gmra.mxu0 %v232
  %v349 = vpop.f32.mrf.mxu0
  %v350 = vadd.f32 %v228, %v349
  %v351 = vpop.f32.mrf.mxu0
  %352 = vmatprep.mubr.f32.mxu0 0.0
  %353 = vmatmul.mubr.f32.gmra.mxu0 %v235
  %v354 = vpop.f32.mrf.mxu0
  %v355 = vadd.f32 %v228, %v354
  %v356 = vpop.f32.mrf.mxu0
  %357 = vmatprep.mubr.f32.mxu0 0.0
  %358 = vmatmul.mubr.f32.gmra.mxu0 %v238
  %v359 = vpop.f32.mrf.mxu0
  %v360 = vadd.f32 %v228, %v359
  %v361 = vpop.f32.mrf.mxu0
  %362 = vmatprep.mubr.f32.mxu0 0.0
  %363 = vmatmul.mubr.f32.gmra.mxu0 %v241
  %v364 = vpop.f32.mrf.mxu0
  %v365 = vadd.f32 %v228, %v364
  %v366 = vpop.f32.mrf.mxu0
  %367 = vmatprep.mubr.f32.mxu0 0.0
  %368 = vmatmul.mubr.f32.gmra.mxu0 %v244
  %v369 = vpop.f32.mrf.mxu0
  %v370 = vadd.f32 %v228, %v369
  %v371 = vpop.f32.mrf.mxu0
  %372 = vmatprep.mubr.f32.mxu0 0.0
  %373 = vmatmul.mubr.f32.gmra.mxu0 %v247
  %v374 = vpop.f32.mrf.mxu0
  %v375 = vadd.f32 %v228, %v374
  %v376 = vpop.f32.mrf.mxu0
  %377 = vmatprep.mubr.f32.mxu0 0.0
  %378 = vmatmul.mubr.f32.gmra.mxu0 %v250
  %v379 = vpop.f32.mrf.mxu0
  %v380 = vadd.f32 %v228, %v379
  %v381 = vpop.f32.mrf.mxu0
  %382 = vmatprep.mubr.f32.mxu0 0.0
  %383 = vmatmul.mubr.f32.gmra.mxu0 %v253
  %v384 = vpop.f32.mrf.mxu0
  %v385 = vadd.f32 %v228, %v384
  %v386 = vpop.f32.mrf.mxu0
  %387 = vmatprep.mubr.f32.mxu0 0.0
  %388 = vmatmul.mubr.f32.gmra.mxu0 %v256
  %v389 = vpop.f32.mrf.mxu0
  %v390 = vadd.f32 %v228, %v389
  %v391 = vpop.f32.mrf.mxu0
  %392 = vmatprep.mubr.f32.mxu0 0.0
  %393 = vmatmul.mubr.f32.gmra.mxu0 %v259
  %v394 = vpop.f32.mrf.mxu0
  %v395 = vadd.f32 %v228, %v394
  %v396 = vpop.f32.mrf.mxu0
  %397 = vmatprep.mubr.f32.mxu0 0.0
  %398 = vmatmul.mubr.f32.gmra.mxu0 %v262
  %v399 = vpop.f32.mrf.mxu0
  %v400 = vadd.f32 %v228, %v399
  %v401 = vpop.f32.mrf.mxu0
  %402 = vmatprep.mubr.f32.mxu0 0.0
  %403 = vmatmul.mubr.f32.gmra.mxu0 %v265
  %v404 = vpop.f32.mrf.mxu0
  %v405 = vadd.f32 %v228, %v404
  %v406 = vpop.f32.mrf.mxu0
  %407 = vmatprep.mubr.f32.mxu0 0.0
  %408 = vmatmul.mubr.f32.gmra.mxu0 %v268
  %v409 = vpop.f32.mrf.mxu0
  %v410 = vadd.f32 %v228, %v409
  %v411 = vpop.f32.mrf.mxu0
  %412 = vmatprep.mubr.f32.mxu0 0.0
  %413 = vmatmul.mubr.f32.gmra.mxu0 %v271
  %v414 = vpop.f32.mrf.mxu0
  %v415 = vadd.f32 %v228, %v414
  %v416 = vpop.f32.mrf.mxu0
  %417 = vmatprep.mubr.f32.mxu0 0.0
  %418 = vmatmul.mubr.f32.gmra.mxu0 %v274
  %v419 = vpop.f32.mrf.mxu0
  %v420 = vadd.f32 %v228, %v419
  %v421 = vpop.f32.mrf.mxu0
  %422 = vmatprep.mubr.f32.mxu0 0.0
  %423 = vmatmul.mubr.f32.gmra.mxu0 %v277
  %v424 = vpop.f32.mrf.mxu0
  %v425 = vadd.f32 %v228, %v424
  %v426 = vpop.f32.mrf.mxu0
  %427 = vdwg.mxu0
  %v428 = vmax.f32 %v350, 0.0
  %v429 = vmax.f32 %v355, 0.0
  %v430 = vmax.f32 %v360, 0.0
  %v431 = vmax.f32 %v365, 0.0
  %v432 = vmax.f32 %v370, 0.0
  %v433 = vmax.f32 %v375, 0.0
  %v434 = vmax.f32 %v380, 0.0
  %v435 = vmax.f32 %v385, 0.0
  %v436 = vmax.f32 %v390, 0.0
  %v437 = vmax.f32 %v395, 0.0
  %v438 = vmax.f32 %v400, 0.0
  %v439 = vmax.f32 %v405, 0.0
  %v440 = vmax.f32 %v410, 0.0
  %v441 = vmax.f32 %v415, 0.0
  %v442 = vmax.f32 %v420, 0.0
  %v443 = vmax.f32 %v425, 0.0
  %v444 = vld [vmem:[%s3] sm:$0xff]
  %v445 = vld [vmem:[%s3 + $0x8] sm:$0xff]
  %v446 = vld [vmem:[%s3 + $0x10] sm:$0xff]
  %v447 = vld [vmem:[%s3 + $0x18] sm:$0xff]
  %v448 = vld [vmem:[%s3 + $0x20] sm:$0xff]
  %v449 = vld [vmem:[%s3 + $0x28] sm:$0xff]
  %v450 = vld [vmem:[%s3 + $0x30] sm:$0xff]
  %v451 = vld [vmem:[%s3 + $0x38] sm:$0xff]
  %v452 = vld [vmem:[%s3 + $0x40] sm:$0xff]
  %v453 = vld [vmem:[%s3 + $0x48] sm:$0xff]
  %v454 = vld [vmem:[%s3 + $0x50] sm:$0xff]
  %v455 = vld [vmem:[%s3 + $0x58] sm:$0xff]
  %v456 = vld [vmem:[%s3 + $0x60] sm:$0xff]
  %v457 = vld [vmem:[%s3 + $0x68] sm:$0xff]
  %v458 = vld [vmem:[%s3 + $0x70] sm:$0xff]
  %v459 = vld [vmem:[%s3 + $0x78] sm:$0xff]
  %v460 = vld [vmem:[%s4] sm:$0x1]
  %v462 = vlaneseq
  %v463 = vshrl.u32 %v462, 7
  %v464 = vsub.s32 0, %v463
  %v465 = vrot.slane %v460, %v464
  %467 = vmatprep.subr.mxu0 0.0
  %468 = vmatpush1.msra.mxu0 %v459
  %469 = vmatprep.subr.mxu0 0.0
  %470 = vmatpush1.msra.mxu0 %v458
  %471 = vmatprep.subr.mxu0 0.0
  %472 = vmatpush1.msra.mxu0 %v457
  %473 = vmatprep.subr.mxu0 0.0
  %474 = vmatpush1.msra.mxu0 %v456
  %475 = vmatprep.subr.mxu0 0.0
  %476 = vmatpush1.msra.mxu0 %v455
  %477 = vmatprep.subr.mxu0 0.0
  %478 = vmatpush1.msra.mxu0 %v454
  %479 = vmatprep.subr.mxu0 0.0
  %480 = vmatpush1.msra.mxu0 %v453
  %481 = vmatprep.subr.mxu0 0.0
  %482 = vmatpush1.msra.mxu0 %v452
  %483 = vmatprep.subr.mxu0 0.0
  %484 = vmatpush1.msra.mxu0 %v451
  %485 = vmatprep.subr.mxu0 0.0
  %486 = vmatpush1.msra.mxu0 %v450
  %487 = vmatprep.subr.mxu0 0.0
  %488 = vmatpush1.msra.mxu0 %v449
  %489 = vmatprep.subr.mxu0 0.0
  %490 = vmatpush1.msra.mxu0 %v448
  %491 = vmatprep.subr.mxu0 0.0
  %492 = vmatpush1.msra.mxu0 %v447
  %493 = vmatprep.subr.mxu0 0.0
  %494 = vmatpush1.msra.mxu0 %v446
  %495 = vmatprep.subr.mxu0 0.0
  %496 = vmatpush1.msra.mxu0 %v445
  %497 = vmatprep.subr.mxu0 0.0
  %498 = vmatpush1.msra.mxu0 %v444
  %499 = vmatprep.subr.mxu0 0.0
  %500 = vmatpush2.msra.mxu0 0.0
  %501 = vmatprep.subr.mxu0 0.0
  %502 = vmatpush2.msra.mxu0 0.0
  %503 = vmatprep.subr.mxu0 0.0
  %504 = vmatpush2.msra.mxu0 0.0
  %505 = vmatprep.subr.mxu0 0.0
  %506 = vmatpush2.msra.mxu0 0.0
  %507 = vmatprep.subr.mxu0 0.0
  %508 = vmatpush2.msra.mxu0 0.0
  %509 = vmatprep.subr.mxu0 0.0
  %510 = vmatpush2.msra.mxu0 0.0
  %511 = vmatprep.subr.mxu0 0.0
  %512 = vmatpush2.msra.mxu0 0.0
  %513 = vmatprep.subr.mxu0 0.0
  %514 = vmatpush2.msra.mxu0 0.0
  %515 = vmatprep.subr.mxu0 0.0
  %516 = vmatpush2.msra.mxu0 0.0
  %517 = vmatprep.subr.mxu0 0.0
  %518 = vmatpush2.msra.mxu0 0.0
  %519 = vmatprep.subr.mxu0 0.0
  %520 = vmatpush2.msra.mxu0 0.0
  %521 = vmatprep.subr.mxu0 0.0
  %522 = vmatpush2.msra.mxu0 0.0
  %523 = vmatprep.subr.mxu0 0.0
  %524 = vmatpush2.msra.mxu0 0.0
  %525 = vmatprep.subr.mxu0 0.0
  %526 = vmatpush2.msra.mxu0 0.0
  %527 = vmatprep.subr.mxu0 0.0
  %528 = vmatpush2.msra.mxu0 0.0
  %529 = vmatprep.subr.mxu0 0.0
  %530 = vmatpush2.msra.mxu0 0.0
  %531 = vmatprep.mubr.f32.mxu0 0.0
  %532 = vmatmul.mubr.f32.gmra.mxu0 %v428
  %v533 = vpop.f32.mrf.mxu0
  %v534 = vadd.f32 %v465, %v533
  %v535 = vpop.f32.mrf.mxu0
  %536 = vmatprep.mubr.f32.mxu0 0.0
  %537 = vmatmul.mubr.f32.gmra.mxu0 %v429
  %v538 = vpop.f32.mrf.mxu0
  %v539 = vadd.f32 %v465, %v538
  %v540 = vpop.f32.mrf.mxu0
  %541 = vmatprep.mubr.f32.mxu0 0.0
  %542 = vmatmul.mubr.f32.gmra.mxu0 %v430
  %v543 = vpop.f32.mrf.mxu0
  %v544 = vadd.f32 %v465, %v543
  %v545 = vpop.f32.mrf.mxu0
  %546 = vmatprep.mubr.f32.mxu0 0.0
  %547 = vmatmul.mubr.f32.gmra.mxu0 %v431
  %v548 = vpop.f32.mrf.mxu0
  %v549 = vadd.f32 %v465, %v548
  %v550 = vpop.f32.mrf.mxu0
  %551 = vmatprep.mubr.f32.mxu0 0.0
  %552 = vmatmul.mubr.f32.gmra.mxu0 %v432
  %v553 = vpop.f32.mrf.mxu0
  %v554 = vadd.f32 %v465, %v553
  %v555 = vpop.f32.mrf.mxu0
  %556 = vmatprep.mubr.f32.mxu0 0.0
  %557 = vmatmul.mubr.f32.gmra.mxu0 %v433
  %v558 = vpop.f32.mrf.mxu0
  %v559 = vadd.f32 %v465, %v558
  %v560 = vpop.f32.mrf.mxu0
  %561 = vmatprep.mubr.f32.mxu0 0.0
  %562 = vmatmul.mubr.f32.gmra.mxu0 %v434
  %v563 = vpop.f32.mrf.mxu0
  %v564 = vadd.f32 %v465, %v563
  %v565 = vpop.f32.mrf.mxu0
  %566 = vmatprep.mubr.f32.mxu0 0.0
  %567 = vmatmul.mubr.f32.gmra.mxu0 %v435
  %v568 = vpop.f32.mrf.mxu0
  %v569 = vadd.f32 %v465, %v568
  %v570 = vpop.f32.mrf.mxu0
  %571 = vmatprep.mubr.f32.mxu0 0.0
  %572 = vmatmul.mubr.f32.gmra.mxu0 %v436
  %v573 = vpop.f32.mrf.mxu0
  %v574 = vadd.f32 %v465, %v573
  %v575 = vpop.f32.mrf.mxu0
  %576 = vmatprep.mubr.f32.mxu0 0.0
  %577 = vmatmul.mubr.f32.gmra.mxu0 %v437
  %v578 = vpop.f32.mrf.mxu0
  %v579 = vadd.f32 %v465, %v578
  %v580 = vpop.f32.mrf.mxu0
  %581 = vmatprep.mubr.f32.mxu0 0.0
  %582 = vmatmul.mubr.f32.gmra.mxu0 %v438
  %v583 = vpop.f32.mrf.mxu0
  %v584 = vadd.f32 %v465, %v583
  %v585 = vpop.f32.mrf.mxu0
  %586 = vmatprep.mubr.f32.mxu0 0.0
  %587 = vmatmul.mubr.f32.gmra.mxu0 %v439
  %v588 = vpop.f32.mrf.mxu0
  %v589 = vadd.f32 %v465, %v588
  %v590 = vpop.f32.mrf.mxu0
  %591 = vmatprep.mubr.f32.mxu0 0.0
  %592 = vmatmul.mubr.f32.gmra.mxu0 %v440
  %v593 = vpop.f32.mrf.mxu0
  %v594 = vadd.f32 %v465, %v593
  %v595 = vpop.f32.mrf.mxu0
  %596 = vmatprep.mubr.f32.mxu0 0.0
  %597 = vmatmul.mubr.f32.gmra.mxu0 %v441
  %v598 = vpop.f32.mrf.mxu0
  %v599 = vadd.f32 %v465, %v598
  %v600 = vpop.f32.mrf.mxu0
  %601 = vmatprep.mubr.f32.mxu0 0.0
  %602 = vmatmul.mubr.f32.gmra.mxu0 %v442
  %v603 = vpop.f32.mrf.mxu0
  %v604 = vadd.f32 %v465, %v603
  %v605 = vpop.f32.mrf.mxu0
  %606 = vmatprep.mubr.f32.mxu0 0.0
  %607 = vmatmul.mubr.f32.gmra.mxu0 %v443
  %v608 = vpop.f32.mrf.mxu0
  %v609 = vadd.f32 %v465, %v608
  %v610 = vpop.f32.mrf.mxu0
  %611 = vdwg.mxu0
  %v612 = vmax.f32 %v534, 0.0
  %v613 = vmax.f32 %v539, 0.0
  %v614 = vmax.f32 %v544, 0.0
  %v615 = vmax.f32 %v549, 0.0
  %v616 = vmax.f32 %v554, 0.0
  %v617 = vmax.f32 %v559, 0.0
  %v618 = vmax.f32 %v564, 0.0
  %v619 = vmax.f32 %v569, 0.0
  %v620 = vmax.f32 %v574, 0.0
  %v621 = vmax.f32 %v579, 0.0
  %v622 = vmax.f32 %v584, 0.0
  %v623 = vmax.f32 %v589, 0.0
  %v624 = vmax.f32 %v594, 0.0
  %v625 = vmax.f32 %v599, 0.0
  %v626 = vmax.f32 %v604, 0.0
  %v627 = vmax.f32 %v609, 0.0
  %v628 = vld [vmem:[%s5] sm:$0x1]
  %s629 = sld [smem:[#allocation2]]
  %v630 = vstv %s629
  %631 = vmatprep.subr.mxu0 0.0
  %632 = vmatpush1.xpose.msra.mxu0 %v627
  %633 = vmatprep.subr.mxu0 0.0
  %634 = vmatpush1.xpose.msra.mxu0 %v626
  %635 = vmatprep.subr.mxu0 0.0
  %636 = vmatpush1.xpose.msra.mxu0 %v625
  %637 = vmatprep.subr.mxu0 0.0
  %638 = vmatpush1.xpose.msra.mxu0 %v624
  %639 = vmatprep.subr.mxu0 0.0
  %640 = vmatpush1.xpose.msra.mxu0 %v623
  %641 = vmatprep.subr.mxu0 0.0
  %642 = vmatpush1.xpose.msra.mxu0 %v622
  %643 = vmatprep.subr.mxu0 0.0
  %644 = vmatpush1.xpose.msra.mxu0 %v621
  %645 = vmatprep.subr.mxu0 0.0
  %646 = vmatpush1.xpose.msra.mxu0 %v620
  %647 = vmatprep.subr.mxu0 0.0
  %648 = vmatpush1.xpose.msra.mxu0 %v619
  %649 = vmatprep.subr.mxu0 0.0
  %650 = vmatpush1.xpose.msra.mxu0 %v618
  %651 = vmatprep.subr.mxu0 0.0
  %652 = vmatpush1.xpose.msra.mxu0 %v617
  %653 = vmatprep.subr.mxu0 0.0
  %654 = vmatpush1.xpose.msra.mxu0 %v616
  %655 = vmatprep.subr.mxu0 0.0
  %656 = vmatpush1.xpose.msra.mxu0 %v615
  %657 = vmatprep.subr.mxu0 0.0
  %658 = vmatpush1.xpose.msra.mxu0 %v614
  %659 = vmatprep.subr.mxu0 0.0
  %660 = vmatpush1.xpose.msra.mxu0 %v613
  %661 = vmatprep.subr.mxu0 0.0
  %662 = vmatpush1.xpose.msra.mxu0 %v612
  %663 = vmatprep.subr.mxu0 0.0
  %664 = vmatpush2.xpose.msra.mxu0 0.0
  %665 = vmatprep.subr.mxu0 0.0
  %666 = vmatpush2.xpose.msra.mxu0 0.0
  %667 = vmatprep.subr.mxu0 0.0
  %668 = vmatpush2.xpose.msra.mxu0 0.0
  %669 = vmatprep.subr.mxu0 0.0
  %670 = vmatpush2.xpose.msra.mxu0 0.0
  %671 = vmatprep.subr.mxu0 0.0
  %672 = vmatpush2.xpose.msra.mxu0 0.0
  %673 = vmatprep.subr.mxu0 0.0
  %674 = vmatpush2.xpose.msra.mxu0 0.0
  %675 = vmatprep.subr.mxu0 0.0
  %676 = vmatpush2.xpose.msra.mxu0 0.0
  %677 = vmatprep.subr.mxu0 0.0
  %678 = vmatpush2.xpose.msra.mxu0 0.0
  %679 = vmatprep.subr.mxu0 0.0
  %680 = vmatpush2.xpose.msra.mxu0 0.0
  %681 = vmatprep.subr.mxu0 0.0
  %682 = vmatpush2.xpose.msra.mxu0 0.0
  %683 = vmatprep.subr.mxu0 0.0
  %684 = vmatpush2.xpose.msra.mxu0 0.0
  %685 = vmatprep.subr.mxu0 0.0
  %686 = vmatpush2.xpose.msra.mxu0 0.0
  %687 = vmatprep.subr.mxu0 0.0
  %688 = vmatpush2.xpose.msra.mxu0 0.0
  %689 = vmatprep.subr.mxu0 0.0
  %690 = vmatpush2.xpose.msra.mxu0 0.0
  %691 = vmatprep.subr.mxu0 0.0
  %692 = vmatpush2.xpose.msra.mxu0 0.0
  %693 = vmatprep.subr.mxu0 0.0
  %694 = vmatpush2.xpose.msra.mxu0 0.0
  %695 = vmatprep.mubr.f32.mxu0 0.0
  %696 = vmatmul.mubr.f32.gmra.mxu0 %v628
  %v697 = vpop.f32.mrf.mxu0
  %v698 = vadd.f32 %v630, %v697
  %v699 = vpop.f32.mrf.mxu0
  %700 = vdwg.mxu0
  %701 = vst [vmem:[%s7] sm:$0x1] %v698
  // Predicated region
  $region30: #{ncf_forward.1} parent=0 // pred_check
    _
  $region31: #{ncf_forward.1} parent=0 // pred_check_branch
    %703 = sbr.rel (0) target = $region33
  $region32: #{ncf_forward.1} parent=0 // pred_region
    _
  $region33: #{ncf_forward.1} parent=0 // pred_fallthru
    _
  // Predicated region
  $region34: #{ncf_forward.1} parent=0 // pred_check
    _
  $region35: #{ncf_forward.1} parent=0 // pred_check_branch
    %705 = sbr.rel (0) target = $region37
  $region36: #{ncf_forward.1} parent=0 // pred_region
    _
  $region37: #{ncf_forward.1} parent=0 // pred_fallthru
    _

</llo_original>
